<compile_context>
chip_gen: v6e
topology: v6e:2x2x1
jax: 0.10.0
libtpu: 0.0.40
codegen_flags: <defaults>
</compile_context>

<pallas_src>
import functools

import jax
import jax.numpy as jnp
from jax.experimental import pallas as pl
from jax.experimental.pallas import tpu as pltpu

_LANES = 128
_SUB = 8


def _dice_count_kernel(y_ref, yt_ref, out_ref, *, n_class, num_blocks,
                       valid_rows, needs_mask):
    """One (sample, split, row-block) grid step.

    y_ref  : (C, S, 128)  logits block, native dtype
    yt_ref : (S, 128)     int32 labels (padded pixels hold -1)
    out_ref: (8, 128)     f32 per-(sample, split) match-count accumulator
    """
    p = pl.program_id(1)
    k = pl.program_id(2)

    @pl.when(k == 0)
    def _():
        out_ref[...] = jnp.zeros_like(out_ref)

    labels = yt_ref[...]                                    # (S, 128)
    s = labels.shape[0]

    # Running argmax over the class axis (unrolled).  Strict ">" keeps the
    # first-occurrence tie-break, and argmax(softmax(x)) == argmax(x) for
    # finite logits (degenerate NaN/inf inputs may differ from torch).
    # Pure dense per-vreg VPU ops — no per-pixel XLU reductions.
    best_idx = jnp.zeros(labels.shape, jnp.int32)
    if n_class > 1:
        best_val = y_ref[0]                                 # (S, 128)
        for c in range(1, n_class):
            v = y_ref[c]
            gt = v > best_val
            best_val = jnp.where(gt, v, best_val)
            best_idx = jnp.where(gt, jnp.int32(c), best_idx)

    match = (best_idx == labels).astype(jnp.float32)        # (S, 128)

    def fold(m):
        # (S, 128) -> (8, 128): sum whole vregs via sublane-aligned static
        # slices (VPU adds only).  The single cross-lane reduction happens
        # once per sample in the wrapper, not once per grid step.
        acc = m[0:_SUB]
        for i in range(_SUB, s, _SUB):
            acc = acc + m[i:i + _SUB]
        return acc

    if needs_mask:
        blk = p * pl.num_programs(2) + k

        @pl.when(blk < num_blocks - 1)
        def _():
            out_ref[...] += fold(match)

        @pl.when(blk >= num_blocks - 1)
        def _():
            # Final (possibly partial) or phantom block: zero rows that lie
            # past the real pixel rows (their block contents are undefined).
            rows = blk * s + jax.lax.broadcasted_iota(jnp.int32, match.shape, 0)
            out_ref[...] += fold(jnp.where(rows < valid_rows, match, 0.0))
    else:
        out_ref[...] += fold(match)


def dice_coefficient_with_logits_multi_mean(y, y_true, n_class, epsilon=1e-6,
                                            max_rows_per_block=None,
                                            n_splits=None,
                                            target_block_bytes=4 * 1024 * 1024):
    """y: (N, C, H, W) float logits; y_true: (N, H, W) integer labels in [0, C)."""
    N, C, H, W = y.shape
    assert C == n_class
    HW = H * W

    # ---- geometry ----------------------------------------------------------
    # Pixels are laid out lane-dense as (rows, 128); rows padded to a multiple
    # of 8 so every kernel tensor is (8,128)-tiled.
    rows = pl.cdiv(HW, _LANES)
    rows_work = pl.cdiv(rows, _SUB) * _SUB
    hw_work = rows_work * _LANES

    itemsize = y.dtype.itemsize
    bytes_per_row = _LANES * (C * itemsize + 4)          # logits + int32 label
    # Rows per grid step: ~target_block_bytes of input per step amortizes the
    # ~0.35 us per-step overhead; double-buffered footprint stays well under
    # the explicit VMEM clamp below on v5e / v6e / v7x.
    s_budget = max(_SUB, int(target_block_bytes // bytes_per_row) // _SUB * _SUB)
    if max_rows_per_block is not None:
        s_budget = max(_SUB, min(s_budget, max_rows_per_block // _SUB * _SUB))
    S = min(s_budget, rows_work)
    num_blocks = pl.cdiv(rows_work, S)

    # 2-way split of the pixel axis keeps both v7x TensorCores busy even when
    # N == 1; harmless on single-TC chips (same total number of grid steps).
    if n_splits is None:
        n_splits = 2 if num_blocks >= 2 else 1
    P = n_splits
    K = pl.cdiv(num_blocks, P)
    # Exact tiling <=> no partial / phantom row blocks to mask in the kernel.
    needs_mask = (P * K * S != rows_work)

    # ---- lane-dense layout (one-time pad only when HW % 1024 != 0) ---------
    y_flat = y.reshape(N, C, HW)
    yt_flat = y_true.reshape(N, HW).astype(jnp.int32)
    if hw_work != HW:
        # Padded pixels get logits 0 (-> pred class 0) and label -1, so they
        # can never count as a match.
        y_flat = jnp.pad(y_flat, ((0, 0), (0, 0), (0, hw_work - HW)))
        yt_flat = jnp.pad(yt_flat, ((0, 0), (0, hw_work - HW)),
                          constant_values=-1)
    y_blk = y_flat.reshape(N, C, rows_work, _LANES)
    yt_blk = yt_flat.reshape(N, rows_work, _LANES)

    def _row_block(p, k):
        # Clamp phantom blocks (only present when tiling is inexact) onto the
        # last real block; their contribution is masked out in the kernel.
        return jnp.minimum(p * K + k, num_blocks - 1)

    cost = pl.CostEstimate(
        flops=int(N * hw_work * (3 * C + 2)),
        transcendentals=0,
        bytes_accessed=int(N * hw_work * (C * itemsize + 4)
                           + N * P * _SUB * _LANES * 4),
    )

    counts = pl.pallas_call(
        functools.partial(_dice_count_kernel, n_class=C, num_blocks=num_blocks,
                          valid_rows=rows_work, needs_mask=needs_mask),
        out_shape=jax.ShapeDtypeStruct((N, P, _SUB, _LANES), jnp.float32),
        grid_spec=pltpu.PrefetchScalarGridSpec(
            num_scalar_prefetch=0,
            grid=(N, P, K),
            in_specs=[
                pl.BlockSpec((None, C, S, _LANES),
                             lambda b, p, k: (b, 0, _row_block(p, k), 0)),
                pl.BlockSpec((None, S, _LANES),
                             lambda b, p, k: (b, _row_block(p, k), 0)),
            ],
            out_specs=pl.BlockSpec((None, None, _SUB, _LANES),
                                   lambda b, p, k: (b, p, 0, 0)),
        ),
        compiler_params=pltpu.CompilerParams(
            dimension_semantics=("parallel", "parallel", "arbitrary"),
            vmem_limit_bytes=32 * 1024 * 1024),
        cost_estimate=cost,
    )(y_blk, yt_blk)

    # Per-sample match count -> dice with the closed-form denominator:
    #   sum(2 * onehot(pred) * onehot(true))   = 2 * #matches
    #   sum(onehot(pred) + onehot(true) + eps) = 2*HW + eps*C*HW
    # (f32 counts are exact up to 2^24 matches per sample — fine for any
    #  realistic image size.)
    matches = counts.reshape(N, -1).sum(axis=1)
    two_over_card = 2.0 / (2.0 * HW + epsilon * C * HW)
    return jnp.mean(matches * two_over_card)


def _reference(y, y_true, n_class, epsilon=1e-6):
    pred = jnp.argmax(jax.nn.softmax(y, axis=1), axis=1)
    op = jax.nn.one_hot(pred, n_class, dtype=jnp.float32).reshape(y.shape[0], -1)
    ot = jax.nn.one_hot(y_true, n_class, dtype=jnp.float32).reshape(y.shape[0], -1)
    inter = (2.0 * op * ot).sum(axis=1)
    card = (op + ot + epsilon).sum(axis=1)
    return (inter / card).mean()


if __name__ == "__main__":
    root = jax.random.PRNGKey(0)

    def run_case(shape, **kw):
        n, c, h, w = shape
        k1, k2 = jax.random.split(jax.random.fold_in(root, h * w * c + n))
        y = jax.random.normal(k1, shape, dtype=jnp.float32)
        yt = jax.random.randint(k2, (n, h, w), 0, c, dtype=jnp.int32)
        out = jax.block_until_ready(
            dice_coefficient_with_logits_multi_mean(y, yt, n_class=c, **kw))
        ref = _reference(y, yt, c)
        assert jnp.allclose(out, ref, atol=1e-5, rtol=1e-5), (shape, kw, out, ref)

    # Default path: single block per sample, small UNet-metric-style shapes.
    run_case((2, 4, 16, 16))
    # Multi-block accumulation + 2-way pixel split, exact tiling (no mask path).
    run_case((2, 4, 64, 64), max_rows_per_block=8)
    # Inexact tiling: lane-tail padding + partial last block (mask path).
    run_case((2, 4, 40, 64), max_rows_per_block=16)
    # Inexact tiling with a phantom block + N == 1 (pixel split carries all
    # the parallelism).
    run_case((1, 3, 48, 48), max_rows_per_block=8)

    print("KERNEL_OK")
</pallas_src>

<mosaic_0001>
module attributes {stable_mosaic.version = 11 : i64} {
  func.func @_dice_count_kernel(%arg0: i32, %arg1: i32, %arg2: i32, %arg3: memref<1x4x8x128xf32, #tpu.memory_space<vmem>>, %arg4: memref<1x8x128xi32, #tpu.memory_space<vmem>>, %arg5: memref<1x1x8x128xf32, #tpu.memory_space<vmem>>) attributes {dimension_semantics = [#tpu.dimension_semantics<parallel>, #tpu.dimension_semantics<parallel>, #tpu.dimension_semantics<arbitrary>], iteration_bounds = array<i64: 2, 1, 1>, scalar_prefetch = 0 : i64, scratch_operands = 0 : i64, tpu.core_type = #tpu.core_type<tc>, window_params = [{transform_indices = @transform_0, window_bounds = array<i64: 1, 4, 8, 128>}, {transform_indices = @transform_1, window_bounds = array<i64: 1, 8, 128>}, {transform_indices = @transform_2, window_bounds = array<i64: 1, 1, 8, 128>}]} {
    %c0_i32 = arith.constant 0 : i32
    %0 = arith.cmpi eq, %arg2, %c0_i32 : i32
    %1 = arith.extui %0 : i1 to i32
    %c0_i32_0 = arith.constant 0 : i32
    %2 = arith.cmpi ne, %1, %c0_i32_0 : i32
    scf.if %2 {
      %cst = arith.constant 0.000000e+00 : f32
      %34 = vector.broadcast %cst : f32 to vector<8x128xf32>
      %c0_25 = arith.constant 0 : index
      %c0_26 = arith.constant 0 : index
      %c0_27 = arith.constant 0 : index
      %c0_28 = arith.constant 0 : index
      %35 = vector.load %arg5[%c0_25, %c0_26, %c0_27, %c0_28] : memref<1x1x8x128xf32, #tpu.memory_space<vmem>>, vector<1x1x8x128xf32>
      %36 = vector.shape_cast %35 : vector<1x1x8x128xf32> to vector<8x128xf32>
      %37 = vector.shape_cast %34 : vector<8x128xf32> to vector<1x1x8x128xf32>
      tpu.vector_store %arg5[%c0_25, %c0_26, %c0_27, %c0_28], %37 {strides = array<i32>} : memref<1x1x8x128xf32, #tpu.memory_space<vmem>>, vector<1x1x8x128xf32>,
    } else {
    }
    %c0 = arith.constant 0 : index
    %c0_1 = arith.constant 0 : index
    %c0_2 = arith.constant 0 : index
    %3 = vector.load %arg4[%c0, %c0_1, %c0_2] : memref<1x8x128xi32, #tpu.memory_space<vmem>>, vector<1x8x128xi32>
    %4 = vector.shape_cast %3 : vector<1x8x128xi32> to vector<8x128xi32>
    %c0_i32_3 = arith.constant 0 : i32
    %5 = vector.broadcast %c0_i32_3 : i32 to vector<8x128xi32>
    %c0_4 = arith.constant 0 : index
    %c0_5 = arith.constant 0 : index
    %c0_6 = arith.constant 0 : index
    %c0_7 = arith.constant 0 : index
    %6 = vector.load %arg3[%c0_4, %c0_5, %c0_6, %c0_7] : memref<1x4x8x128xf32, #tpu.memory_space<vmem>>, vector<1x1x8x128xf32>
    %7 = vector.shape_cast %6 : vector<1x1x8x128xf32> to vector<8x128xf32>
    %c0_8 = arith.constant 0 : index
    %c1 = arith.constant 1 : index
    %c0_9 = arith.constant 0 : index
    %c0_10 = arith.constant 0 : index
    %8 = vector.load %arg3[%c0_8, %c1, %c0_9, %c0_10] : memref<1x4x8x128xf32, #tpu.memory_space<vmem>>, vector<1x1x8x128xf32>
    %9 = vector.shape_cast %8 : vector<1x1x8x128xf32> to vector<8x128xf32>
    %10 = arith.cmpf ogt, %9, %7 : vector<8x128xf32>
    %11 = arith.select %10, %9, %7 : vector<8x128xi1>, vector<8x128xf32>
    %c1_i32 = arith.constant 1 : i32
    %12 = vector.broadcast %c1_i32 : i32 to vector<8x128xi32>
    %13 = arith.select %10, %12, %5 : vector<8x128xi1>, vector<8x128xi32>
    %c0_11 = arith.constant 0 : index
    %c2 = arith.constant 2 : index
    %c0_12 = arith.constant 0 : index
    %c0_13 = arith.constant 0 : index
    %14 = vector.load %arg3[%c0_11, %c2, %c0_12, %c0_13] : memref<1x4x8x128xf32, #tpu.memory_space<vmem>>, vector<1x1x8x128xf32>
    %15 = vector.shape_cast %14 : vector<1x1x8x128xf32> to vector<8x128xf32>
    %16 = arith.cmpf ogt, %15, %11 : vector<8x128xf32>
    %17 = arith.select %16, %15, %11 : vector<8x128xi1>, vector<8x128xf32>
    %c2_i32 = arith.constant 2 : i32
    %18 = vector.broadcast %c2_i32 : i32 to vector<8x128xi32>
    %19 = arith.select %16, %18, %13 : vector<8x128xi1>, vector<8x128xi32>
    %c0_14 = arith.constant 0 : index
    %c3 = arith.constant 3 : index
    %c0_15 = arith.constant 0 : index
    %c0_16 = arith.constant 0 : index
    %20 = vector.load %arg3[%c0_14, %c3, %c0_15, %c0_16] : memref<1x4x8x128xf32, #tpu.memory_space<vmem>>, vector<1x1x8x128xf32>
    %21 = vector.shape_cast %20 : vector<1x1x8x128xf32> to vector<8x128xf32>
    %22 = arith.cmpf ogt, %21, %17 : vector<8x128xf32>
    %c3_i32 = arith.constant 3 : i32
    %23 = vector.broadcast %c3_i32 : i32 to vector<8x128xi32>
    %24 = arith.select %22, %23, %19 : vector<8x128xi1>, vector<8x128xi32>
    %25 = arith.cmpi eq, %24, %4 : vector<8x128xi32>
    %26 = arith.extui %25 : vector<8x128xi1> to vector<8x128xi32>
    %27 = arith.sitofp %26 : vector<8x128xi32> to vector<8x128xf32>
    %c0_17 = arith.constant 0 : index
    %c0_18 = arith.constant 0 : index
    %c0_19 = arith.constant 0 : index
    %c0_20 = arith.constant 0 : index
    %28 = vector.load %arg5[%c0_17, %c0_18, %c0_19, %c0_20] : memref<1x1x8x128xf32, #tpu.memory_space<vmem>>, vector<1x1x8x128xf32>
    %29 = vector.shape_cast %28 : vector<1x1x8x128xf32> to vector<8x128xf32>
    %30 = arith.addf %29, %27 : vector<8x128xf32>
    %c0_21 = arith.constant 0 : index
    %c0_22 = arith.constant 0 : index
    %c0_23 = arith.constant 0 : index
    %c0_24 = arith.constant 0 : index
    %31 = vector.load %arg5[%c0_21, %c0_22, %c0_23, %c0_24] : memref<1x1x8x128xf32, #tpu.memory_space<vmem>>, vector<1x1x8x128xf32>
    %32 = vector.shape_cast %31 : vector<1x1x8x128xf32> to vector<8x128xf32>
    %33 = vector.shape_cast %30 : vector<8x128xf32> to vector<1x1x8x128xf32>
    tpu.vector_store %arg5[%c0_21, %c0_22, %c0_23, %c0_24], %33 {strides = array<i32>} : memref<1x1x8x128xf32, #tpu.memory_space<vmem>>, vector<1x1x8x128xf32>,
    return
  }
  func.func @transform_0(%arg0: i32, %arg1: i32, %arg2: i32) -> (i32, i32, i32, i32) {
    %c1_i32 = arith.constant 1 : i32
    %0 = arith.muli %arg1, %c1_i32 : i32
    %1 = arith.addi %0, %arg2 : i32
    %c0_i32 = arith.constant 0 : i32
    %2 = arith.minsi %1, %c0_i32 : i32
    %c0_i32_0 = arith.constant 0 : i32
    %c0_i32_1 = arith.constant 0 : i32
    %c0_i32_2 = arith.constant 0 : i32
    return %arg0, %c0_i32_0, %2, %c0_i32_1 : i32, i32, i32, i32
  }
  func.func @transform_1(%arg0: i32, %arg1: i32, %arg2: i32) -> (i32, i32, i32) {
    %c1_i32 = arith.constant 1 : i32
    %0 = arith.muli %arg1, %c1_i32 : i32
    %1 = arith.addi %0, %arg2 : i32
    %c0_i32 = arith.constant 0 : i32
    %2 = arith.minsi %1, %c0_i32 : i32
    %c0_i32_0 = arith.constant 0 : i32
    %c0_i32_1 = arith.constant 0 : i32
    return %arg0, %2, %c0_i32_0 : i32, i32, i32
  }
  func.func @transform_2(%arg0: i32, %arg1: i32, %arg2: i32) -> (i32, i32, i32, i32) {
    %c0_i32 = arith.constant 0 : i32
    %c0_i32_0 = arith.constant 0 : i32
    %c0_i32_1 = arith.constant 0 : i32
    return %arg0, %arg1, %c0_i32, %c0_i32_0 : i32, i32, i32, i32
  }
}

</mosaic_0001>

<llo_original>
// kernel: tpu_custom_call.1
$region0: #{tpu_custom_call.1}
  #allocation0 [shape = 'u32[]', space=smem, size = 0x4, offset = 0x4, fixed_abs, tag = 'smem constant byte address 0x4 - core index']
  #allocation1 [shape = 'u32[144,128]{1,0:T(1,128)}', space=vmem, size = 0x12000, scoped, tag = 'internal scratch']
  %s0 = inlined_call_operand.hbm [shape: f32[2,4,8,128], index: 0, kind: input, shape index: {}]
  %s1 = inlined_call_operand.hbm [shape: s32[2,8,128], index: 1, kind: input, shape index: {}]
  %s2 = inlined_call_operand.hbm [shape: f32[2,1,8,128], index: 2, kind: output, shape index: {}]
  %s3 = sld [smem:[#allocation0]]
  $region53: #{tpu_custom_call.1} parent=0
    _
  %s5 = ssub.s32 1, %s3
  %s6 = scalar_select 0, %s5, %s3
  $region1: #{tpu_custom_call.1} parent=0
    #allocation2 [shape = 'u8[32768]{0}', space=vmem, size = 0x8000, scoped, tag = 'input window, operand 0']
    #allocation3 [shape = 's32[2]{0}', space=sflag, size = 0x8, scoped, tag = 'scoped memory for tpu_custom_call.1']
    #allocation4 [shape = 's32[2]{0}', space=sflag, size = 0x8, scoped, tag = 'scoped memory for tpu_custom_call.1']
    #allocation5 [shape = 'u8[8192]{0}', space=vmem, size = 0x2000, scoped, tag = 'input window, operand 1']
    #allocation6 [shape = 's32[2]{0}', space=sflag, size = 0x8, scoped, tag = 'scoped memory for tpu_custom_call.1']
    #allocation7 [shape = 'u8[8192]{0}', space=vmem, size = 0x2000, scoped, tag = 'output window, operand 0']
    %7 = vsyncpa [#allocation3], 0
    %s8 = scalar_lea.sflag [#allocation3], 1
    %9 = vsyncpa %s8, 0
    %10 = vsyncpa [#allocation6], 0
    %s11 = scalar_lea.sflag [#allocation6], 1
    %12 = vsyncpa %s11, 0
    %13 = vsyncpa [#allocation4], 0
    %s14 = scalar_lea.sflag [#allocation4], 1
    %15 = vsyncpa %s14, 0
    loop: start=0, step=1, limit=4
    $region2: #{tpu_custom_call.1} parent=1 // loop_pre_header
      _
    $region3: #{tpu_custom_call.1} parent=1 // loop_header
      %s17 = sphi 0, %s21
      %p18 = scmp.ge.s32.totalorder %s17, 4
      %s24 = sphi 0, %s43
      %s25 = sphi 0, %s39
      %s26 = sphi 0, %s35
      %s27 = sphi 0, %s24
      %s28 = sphi 0, %s25
      %s29 = sphi 0, %s26
      %s30 = sphi 0, %s27
      %s31 = sphi 0, %s28
      %s32 = sphi 0, %s29
      %s54 = sphi 0, %s56
      %s57 = sphi 0, %s54
      %s58 = sphi 0, %s57
      %s74 = sphi 0, %s58
      %s88 = sphi 0, %s90
      %s91 = sphi 0, %s88
      %s92 = sphi 0, %s91
      %s108 = sphi 0, %s92
      %s116 = sphi 0, %s118
      %s119 = sphi 0, %s116
      %s120 = sphi 0, %s119
      %s136 = sphi 0, %s120
    $region4: #{tpu_custom_call.1} parent=1 // loop_header_branch
      %20 = sbr.rel (%p18) target = $region8
    $region5: #{tpu_custom_call.1} parent=1 // loop_body
      %s22 = ssub.s32 %s17, 1
      %s23 = ssub.s32 %s17, 2
      %s33 = sadd.s32 1, %s26
      %p34 = scmp.ge.s32.totalorder %s33, 1
      %s35 = scalar_select %p34, 0, %s33
      %s36 = sadd.s32 1, %s25
      %s37 = scalar_select %p34, %s36, %s25
      %p38 = scmp.ge.s32.totalorder %s37, 1
      %s39 = scalar_select %p38, 0, %s37
      %s40 = sadd.s32 1, %s24
      %s41 = scalar_select %p38, %s40, %s24
      %p42 = scmp.ge.s32.totalorder %s41, 2
      %s43 = scalar_select %p42, 0, %s41
      %s44 = sadd.s32 %s25, %s26
      %p45 = scmp.lt.s32.totalorder %s44, 0
      %s46 = scalar_select %p45, %s44, 0
      %s47 = sadd.s32 %s39, %s35
      %p48 = scmp.lt.s32.totalorder %s47, 0
      %s49 = scalar_select %p48, %s47, 0
      %s50 = ssub.s32 %s24, %s43
      %s51 = ssub.s32 %s46, %s49
      %s52 = sor.u32 %s50, %s51
      %p53 = scmp.eq.s32.totalorder %s52, 0
      %s55 = sadd.s32 %s54, 1
      %s56 = scalar_select %p53, %s54, %s55
      %p59 = pneg %p53
      %p60 = scmp.eq.s32.totalorder %s17, 1
      %p61 = por %p59, %p60
      %p62 = scmp.ne.s32.totalorder %s54, %s57
      %p63 = scmp.eq.s32.totalorder %s17, 0
      %p64 = por %p62, %p63
      %p65 = scmp.ne.s32.totalorder %s54, %s57
      %p66 = scmp.eq.s32.totalorder %s22, 1
      %p67 = por %p65, %p66
      %p68 = scmp.ne.s32.totalorder %s57, %s58
      %p69 = scmp.eq.s32.totalorder %s22, 0
      %p70 = por %p68, %p69
      %p71 = scmp.ne.s32.totalorder %s57, %s58
      %p72 = scmp.eq.s32.totalorder %s23, 1
      %p73 = por %p71, %p72
      %p75 = scmp.ne.s32.totalorder %s58, %s74
      %p76 = scmp.eq.s32.totalorder %s23, 0
      %p77 = por %p75, %p76
      %s78 = sadd.s32 %s25, %s26
      %p79 = scmp.lt.s32.totalorder %s78, 0
      %s80 = scalar_select %p79, %s78, 0
      %s81 = sadd.s32 %s39, %s35
      %p82 = scmp.lt.s32.totalorder %s81, 0
      %s83 = scalar_select %p82, %s81, 0
      %s84 = ssub.s32 %s24, %s43
      %s85 = ssub.s32 %s80, %s83
      %s86 = sor.u32 %s84, %s85
      %p87 = scmp.eq.s32.totalorder %s86, 0
      %s89 = sadd.s32 %s88, 1
      %s90 = scalar_select %p87, %s88, %s89
      %p93 = pneg %p87
      %p94 = scmp.eq.s32.totalorder %s17, 1
      %p95 = por %p93, %p94
      %p96 = scmp.ne.s32.totalorder %s88, %s91
      %p97 = scmp.eq.s32.totalorder %s17, 0
      %p98 = por %p96, %p97
      %p99 = scmp.ne.s32.totalorder %s88, %s91
      %p100 = scmp.eq.s32.totalorder %s22, 1
      %p101 = por %p99, %p100
      %p102 = scmp.ne.s32.totalorder %s91, %s92
      %p103 = scmp.eq.s32.totalorder %s22, 0
      %p104 = por %p102, %p103
      %p105 = scmp.ne.s32.totalorder %s91, %s92
      %p106 = scmp.eq.s32.totalorder %s23, 1
      %p107 = por %p105, %p106
      %p109 = scmp.ne.s32.totalorder %s92, %s108
      %p110 = scmp.eq.s32.totalorder %s23, 0
      %p111 = por %p109, %p110
      %s112 = ssub.s32 %s24, %s43
      %s113 = ssub.s32 %s25, %s39
      %s114 = sor.u32 %s112, %s113
      %p115 = scmp.eq.s32.totalorder %s114, 0
      %s117 = sadd.s32 %s116, 1
      %s118 = scalar_select %p115, %s116, %s117
      %p121 = pneg %p115
      %p122 = scmp.eq.s32.totalorder %s17, 1
      %p123 = por %p121, %p122
      %p124 = scmp.ne.s32.totalorder %s116, %s119
      %p125 = scmp.eq.s32.totalorder %s17, 0
      %p126 = por %p124, %p125
      %p127 = scmp.ne.s32.totalorder %s116, %s119
      %p128 = scmp.eq.s32.totalorder %s22, 1
      %p129 = por %p127, %p128
      %p130 = scmp.ne.s32.totalorder %s119, %s120
      %p131 = scmp.eq.s32.totalorder %s22, 0
      %p132 = por %p130, %p131
      %p133 = scmp.ne.s32.totalorder %s119, %s120
      %p134 = scmp.eq.s32.totalorder %s23, 1
      %p135 = por %p133, %p134
      %p137 = scmp.ne.s32.totalorder %s120, %s136
      %p138 = scmp.eq.s32.totalorder %s23, 0
      %p139 = por %p137, %p138
      %p140 = scmp.le.s32.totalorder 1, %s17
      %p141 = scmp.lt.s32.totalorder %s17, 3
      %p142 = pnand %p140, %p141
      %p143 = pneg %p142
      // Predicated region
      $region9: #{tpu_custom_call.1} parent=5 // pred_check
        _
      $region10: #{tpu_custom_call.1} parent=5 // pred_check_branch
        %145 = sbr.rel (%p142) target = $region12
      $region11: #{tpu_custom_call.1} parent=5 // pred_region
        %s146 = ssub.s32 %s17, 1
      $region12: #{tpu_custom_call.1} parent=5 // pred_fallthru
        _
      %p147 = scmp.lt.s32.totalorder %s17, 2
      // Predicated region
      $region13: #{tpu_custom_call.1} parent=5 // pred_check
        %p148 = pneg %p147
      $region14: #{tpu_custom_call.1} parent=5 // pred_check_branch
        %150 = sbr.rel (%p148) target = $region16
      $region15: #{tpu_custom_call.1} parent=5 // pred_region
        // Predicated region
        $region17: #{tpu_custom_call.1} parent=15 // pred_check
          %p151 = pneg %p64
        $region18: #{tpu_custom_call.1} parent=15 // pred_check_branch
          %153 = sbr.rel (%p151) target = $region20
        $region19: #{tpu_custom_call.1} parent=15 // pred_region
          %s154 = sand.u32 %s54, 1
          %s155 = scalar_lea.sflag [#allocation3], %s154
          %s156 = sand.u32 %s54, 1
          %s157 = smul.addr %s156, 32
          %s158 = scalar_lea.vmem [#allocation2], %s157
          %s159 = sadd.s32 %s25, %s26
          %p160 = scmp.lt.s32.totalorder %s159, 0
          %s161 = scalar_select %p160, %s159, 0
          %s163 = ssub.s32 512, 512
          %164 = vsyncadd %s155, %s163
          %s165 = smul.addr %s24, 4
          %s166 = sadd.s32 %s161, %s165
          %s167 = smul.addr %s166, 128
          %s168 = scalar_lea.hbm %s0, %s167
          %s169 = sshll.u32 %s158, 4
          %s170 = int_to_ptr.vmem [resolvable:$true] %s169
          %175 = dma.hbm_to_vmem [thread:$0]  %s168, 512, %s170, %s155, 128, 128, 8
        $region20: #{tpu_custom_call.1} parent=15 // pred_fallthru
          _
        // Predicated region
        $region21: #{tpu_custom_call.1} parent=15 // pred_check
          %p176 = pneg %p98
        $region22: #{tpu_custom_call.1} parent=15 // pred_check_branch
          %178 = sbr.rel (%p176) target = $region24
        $region23: #{tpu_custom_call.1} parent=15 // pred_region
          %s179 = sand.u32 %s88, 1
          %s180 = scalar_lea.sflag [#allocation6], %s179
          %s181 = sand.u32 %s88, 1
          %s182 = smul.addr %s181, 8
          %s183 = scalar_lea.vmem [#allocation5], %s182
          %s184 = sadd.s32 %s25, %s26
          %p185 = scmp.lt.s32.totalorder %s184, 0
          %s186 = scalar_select %p185, %s184, 0
          %s188 = ssub.s32 128, 128
          %189 = vsyncadd %s180, %s188
          %s190 = sadd.s32 %s186, %s24
          %s191 = smul.addr %s190, 128
          %s192 = scalar_lea.hbm %s1, %s191
          %s194 = sshll.u32 %s183, 4
          %s195 = int_to_ptr.vmem [resolvable:$true] %s194
          %197 = dma.hbm_to_vmem [thread:$0]  %s192, 128, %s195, %s180
        $region24: #{tpu_custom_call.1} parent=15 // pred_fallthru
          _
      $region16: #{tpu_custom_call.1} parent=5 // pred_fallthru
        _
      %p198 = scmp.le.s32.totalorder 1, %s17
      %p199 = scmp.lt.s32.totalorder %s17, 3
      %p200 = pnand %p198, %p199
      %p201 = pneg %p200
      // Predicated region
      $region25: #{tpu_custom_call.1} parent=5 // pred_check
        _
      $region26: #{tpu_custom_call.1} parent=5 // pred_check_branch
        %203 = sbr.rel (%p200) target = $region28
      $region27: #{tpu_custom_call.1} parent=5 // pred_region
        %s204 = ssub.s32 %s17, 1
        %s205 = sand.u32 %s57, 1
        %s206 = scalar_lea.sflag [#allocation3], %s205
        %s207 = sand.u32 %s57, 1
        %s208 = smul.addr %s207, 32
        %s209 = scalar_lea.vmem [#allocation2], %s208
        // Predicated region
        $region29: #{tpu_custom_call.1} parent=27 // pred_check
          %p210 = pneg %p70
        $region30: #{tpu_custom_call.1} parent=27 // pred_check_branch
          %212 = sbr.rel (%p210) target = $region32
        $region31: #{tpu_custom_call.1} parent=27 // pred_region
          %213 = dma.done %s206, 512
        $region32: #{tpu_custom_call.1} parent=27 // pred_fallthru
          _
        %s214 = sand.u32 %s91, 1
        %s215 = scalar_lea.sflag [#allocation6], %s214
        %s216 = sand.u32 %s91, 1
        %s217 = smul.addr %s216, 8
        %s218 = scalar_lea.vmem [#allocation5], %s217
        // Predicated region
        $region33: #{tpu_custom_call.1} parent=27 // pred_check
          %p219 = pneg %p104
        $region34: #{tpu_custom_call.1} parent=27 // pred_check_branch
          %221 = sbr.rel (%p219) target = $region36
        $region35: #{tpu_custom_call.1} parent=27 // pred_region
          %222 = dma.done %s215, 128
        $region36: #{tpu_custom_call.1} parent=27 // pred_fallthru
          _
        %s223 = sand.u32 %s57, 1
        %s224 = scalar_lea.sflag [#allocation3], %s223
        %s225 = sand.u32 %s57, 1
        %s226 = smul.addr %s225, 32
        %s227 = scalar_lea.vmem [#allocation2], %s226
        %p228 = pneg %p70
        %p229 = pneg %p67
        %s230 = sand.u32 %s91, 1
        %s231 = scalar_lea.sflag [#allocation6], %s230
        %s232 = sand.u32 %s91, 1
        %s233 = smul.addr %s232, 8
        %s234 = scalar_lea.vmem [#allocation5], %s233
        %p235 = pneg %p104
        %p236 = pneg %p101
        %p237 = pneg %p132
        %p238 = pneg %p129
        %s239 = sand.u32 %s119, 1
        %s240 = scalar_lea.sflag [#allocation4], %s239
        %s241 = sand.u32 %s119, 1
        %s242 = smul.addr %s241, 8
        %s243 = scalar_lea.vmem [#allocation7], %s242
        %s244 = sadd.s32 %s28, %s29
        %p245 = scmp.lt.s32.totalorder %s244, 0
        %s246 = scalar_select %p245, %s244, 0
        %s247 = sadd.s32 %s28, %s29
        %p248 = scmp.lt.s32.totalorder %s247, 0
        %s249 = scalar_select %p248, %s247, 0
        %p250 = scmp.eq.s32.totalorder %s29, 0
        // Predicated region
        $region37: #{tpu_custom_call.1} parent=27 // pred_check
          %p251 = pneg %p250
        $region38: #{tpu_custom_call.1} parent=27 // pred_check_branch
          %253 = sbr.rel (%p251) target = $region40
        $region39: #{tpu_custom_call.1} parent=27 // pred_region
          %254 = vst [vmem:[%s243] sm:$0xff] 0.0
        $region40: #{tpu_custom_call.1} parent=27 // pred_fallthru
          _
        %v255 = vld [vmem:[%s218] sm:$0xff]
        %v256 = vld [vmem:[%s209] sm:$0xff]
        %s257 = scalar_lea.vmem %s209, 8 [#allocation2]
        %v258 = vld [vmem:[%s257] sm:$0xff]
        %vm259 = vcmp.gt.f32.partialorder %v258, %v256
        %v260 = vsel %vm259, %v258, %v256
        %v261 = vsel %vm259, 1, 0
        %s262 = scalar_lea.vmem %s209, 16 [#allocation2]
        %v263 = vld [vmem:[%s262] sm:$0xff]
        %vm264 = vcmp.gt.f32.partialorder %v263, %v260
        %v265 = vsel %vm264, %v263, %v260
        %v266 = vsel %vm264, 2, %v261
        %s267 = scalar_lea.vmem %s209, 24 [#allocation2]
        %v268 = vld [vmem:[%s267] sm:$0xff]
        %vm269 = vcmp.gt.f32.partialorder %v268, %v265
        %v270 = vsel %vm269, 3, %v266
        %vm271 = vcmp.eq.s32.totalorder %v270, %v255
        %v272 = vsel %vm271, 1, 0
        %v273 = vcvt.s32.f32 %v272
        %v274 = vld [vmem:[%s243] sm:$0xff]
        %v275 = vadd.f32 %v274, %v273
        %276 = vst [vmem:[%s243] sm:$0xff] %v275
        %s277 = sand.u32 %s119, 1
        %s278 = scalar_lea.sflag [#allocation4], %s277
        %s279 = sand.u32 %s119, 1
        %s280 = smul.addr %s279, 8
        %s281 = scalar_lea.vmem [#allocation7], %s280
        // Predicated region
        $region41: #{tpu_custom_call.1} parent=27 // pred_check
          %p282 = pneg %p129
        $region42: #{tpu_custom_call.1} parent=27 // pred_check_branch
          %284 = sbr.rel (%p282) target = $region44
        $region43: #{tpu_custom_call.1} parent=27 // pred_region
          %s286 = ssub.s32 128, 128
          %287 = vsyncadd %s278, %s286
          %s288 = sadd.s32 %s28, %s27
          %s289 = smul.addr %s288, 128
          %s290 = scalar_lea.hbm %s2, %s289
          %s292 = sshll.u32 %s281, 4
          %s293 = int_to_ptr.vmem [resolvable:$true] %s292
          %295 = dma.vmem_to_hbm [thread:$0]  %s293, 128, %s290, %s278
        $region44: #{tpu_custom_call.1} parent=27 // pred_fallthru
          _
      $region28: #{tpu_custom_call.1} parent=5 // pred_fallthru
        _
      %p296 = scmp.le.s32.totalorder 2, %s17
      // Predicated region
      $region45: #{tpu_custom_call.1} parent=5 // pred_check
        %p297 = pneg %p296
      $region46: #{tpu_custom_call.1} parent=5 // pred_check_branch
        %299 = sbr.rel (%p297) target = $region48
      $region47: #{tpu_custom_call.1} parent=5 // pred_region
        %s300 = ssub.s32 %s17, 2
        // Predicated region
        $region49: #{tpu_custom_call.1} parent=47 // pred_check
          %p301 = pneg %p135
        $region50: #{tpu_custom_call.1} parent=47 // pred_check_branch
          %303 = sbr.rel (%p301) target = $region52
        $region51: #{tpu_custom_call.1} parent=47 // pred_region
          %s304 = sand.u32 %s120, 1
          %s305 = scalar_lea.sflag [#allocation4], %s304
          %s306 = sand.u32 %s120, 1
          %s307 = smul.addr %s306, 8
          %s308 = scalar_lea.vmem [#allocation7], %s307
          %309 = dma.done %s305, 128
        $region52: #{tpu_custom_call.1} parent=47 // pred_fallthru
          _
      $region48: #{tpu_custom_call.1} parent=5 // pred_fallthru
        _
    $region6: #{tpu_custom_call.1} parent=1 // loop_footer
      %s21 = sadd.s32 1, %s17
    $region7: #{tpu_custom_call.1} parent=1 // loop_footer_branch
      %16 = sbr.rel target = $region3
    $region8: #{tpu_custom_call.1} parent=1 // loop_exit
      _
    %310 = vsyncpa [#allocation3], 1
    %s311 = scalar_lea.sflag [#allocation3], 1
    %312 = vsyncpa %s311, 1
    %313 = vsyncpa [#allocation6], 1
    %s314 = scalar_lea.sflag [#allocation6], 1
    %315 = vsyncpa %s314, 1
    %316 = vsyncpa [#allocation4], 1
    %s317 = scalar_lea.sflag [#allocation4], 1
    %318 = vsyncpa %s317, 1

</llo_original>
